<compile_context>
chip_gen: v7x
topology: tpu7x:2x2x1
jax: 0.10.0
libtpu: 0.0.40
codegen_flags: <defaults>
</compile_context>

<pallas_src>
import jax
import jax.numpy as jnp
from jax import lax
from jax.experimental import pallas as pl
from jax.experimental.pallas import tpu as pltpu


def bahdanau_kernel(q_ref, k_ref, wa_ref, ua_ref, b_ref, va_ref,
                    ctx_ref, w_ref, wq_sc, m_sc, l_sc):
    bt, ts, h = k_ref.shape
    ki = pl.program_id(1)

    @pl.when(ki == 0)
    def _init():
        # Wa(query) + folded (Wa_b + Ua_b): once per batch tile (bf16 in, f32 acc).
        wq = jnp.dot(q_ref[...].astype(jnp.bfloat16), wa_ref[...],
                     preferred_element_type=jnp.float32)
        wq_sc[...] = wq + b_ref[...]
        m_sc[...] = jnp.full_like(m_sc, -jnp.inf)
        l_sc[...] = jnp.zeros_like(l_sc)
        ctx_ref[...] = jnp.zeros_like(ctx_ref)

    k_f32 = k_ref[...]                                              # (bt, ts, H) f32

    # Ua(keys): one big MXU matmul over all bt*ts rows (bf16 in, f32 acc).
    uk = lax.dot_general(
        k_f32.astype(jnp.bfloat16).reshape(bt * ts, h), ua_ref[...],
        dimension_numbers=(((1,), (0,)), ((), ())),
        preferred_element_type=jnp.float32).reshape(bt, ts, h)      # (bt, ts, H)

    # TODO(synk): bf16 tanh is ~2x EUP throughput on v6e/v7x if the EUP slot
    # binds; kept f32 so the same kernel stays correct/fast on v5e.
    t = jnp.tanh(wq_sc[...][:, None, :] + uk)                       # (bt, ts, H)

    # Va projection = VPU multiply + lane reduce.  Va bias dropped exactly
    # (softmax is shift-invariant).
    scores = jnp.sum(t * va_ref[...], axis=-1)                      # (bt, ts)

    # Online-softmax statistics + context accumulation (resident across ki).
    m_prev = m_sc[...]
    m_new = jnp.maximum(m_prev, jnp.max(scores, axis=-1, keepdims=True))
    alpha = jnp.exp(m_prev - m_new)                                 # (bt, 1)
    e = jnp.exp(scores - m_new)                                     # (bt, ts)
    m_sc[...] = m_new
    l_sc[...] = alpha * l_sc[...] + jnp.sum(e, axis=-1, keepdims=True)
    ctx_ref[...] = (alpha * ctx_ref[...]
                    + jnp.sum(e[:, :, None] * k_f32, axis=1)).astype(ctx_ref.dtype)

    # Stash this tile's raw scores (leading-dim dynamic store); normalized in
    # one shot at the last step, which is exactly softmax given final m/l.
    w_ref[ki] = scores.astype(w_ref.dtype)

    @pl.when(ki == pl.num_programs(1) - 1)
    def _finalize():
        inv = pl.reciprocal(l_sc[...], approx=False)                # exact; (bt,1) only
        ctx_ref[...] = (ctx_ref[...] * inv).astype(ctx_ref.dtype)
        w_ref[...] = (jnp.exp(w_ref[...] - m_sc[...][None])
                      * inv[None]).astype(w_ref.dtype)


def _round_up(x, m):
    return ((x + m - 1) // m) * m


def _pick_seq_tile(s, max_ts):
    """Largest divisor of S that is <= max_ts, preferring 128/8-aligned sizes."""
    max_ts = int(max(1, min(s, max_ts)))
    if max_ts >= s:
        return s
    for align in (128, 8, 1):
        start = (max_ts // align) * align
        for cand in range(start, 0, -align):
            if s % cand == 0:
                return cand
    return s


def _select_tiles(batch, s, h, itemsize):
    """VMEM-aware (generation-aware via get_tpu_info) batch / sequence tiles."""
    try:
        cap = int(pltpu.get_tpu_info().vmem_capacity_bytes)
    except Exception:
        cap = 64 << 20                          # conservative default (v7x per-TC VMEM)
    budget = cap // 2                           # headroom: double buffering, spills

    # Live f32 footprint per grid step ~= 2x double-buffered keys tile plus
    # ~2 (bt, ts, H) f32 intermediates (uk, tanh)  =>  ~4 * bt * ts * H * 4 B.
    per_bt_per_s = 4 * h * 4
    ts = _pick_seq_tile(s, budget // (8 * per_bt_per_s))

    bt = max(8, (budget // (ts * per_bt_per_s)) // 8 * 8)
    bt = min(bt, 256)                           # MXU M-dim cap / diminishing returns
    bt = min(bt, max(8, _round_up(batch, 8)))   # never tile past the (padded) batch
    if batch > 8:
        # keep >= 2 grid steps on the parallel batch axis (v7x has 2 TensorCores)
        bt = min(bt, max(8, _round_up(-(-batch // 2), 8)))
    b_pad = _round_up(batch, bt)
    return bt, ts, b_pad, cap


def bahdanau_attention(query, keys, params):
    """query: (B,1,H), keys: (B,S,H) -> (context (B,1,H), weights (B,1,S))."""
    B, _, H = query.shape
    _, S, _ = keys.shape
    dtype = query.dtype
    itemsize = jnp.dtype(dtype).itemsize

    bt, ts, b_pad, vmem_cap = _select_tiles(B, S, H, itemsize)
    nk = S // ts
    grid = (b_pad // bt, nk)

    q2 = query.reshape(B, H)                    # free reshape
    if b_pad != B:                              # pad batch to a multiple of the tile
        q2 = jnp.pad(q2, ((0, b_pad - B), (0, 0)))
        keys_p = jnp.pad(keys, ((0, b_pad - B), (0, 0), (0, 0)))
    else:
        keys_p = keys

    # nn.Linear weights: pre-transpose once in the wrapper (kernel contracts
    # dim 0 -> no per-step weight transpose) and cast to bf16 for the MXU.
    wa_t = jnp.asarray(params["Wa_w"]).T.astype(jnp.bfloat16)      # (H_in, H_out)
    ua_t = jnp.asarray(params["Ua_w"]).T.astype(jnp.bfloat16)
    bias = (params["Wa_b"] + params["Ua_b"]).reshape(1, H).astype(jnp.float32)
    va_row = params["Va_w"].reshape(1, H).astype(jnp.float32)

    # Explicit VMEM limit sized to the chosen tiles (the scoped default of
    # 16/32 MiB — not physical VMEM — is what gates tile size otherwise).
    need = (4 * bt * ts * H * 4                      # keys x2 (dbl buf) + uk + tanh
            + 2 * bt * H * 4 + 2 * nk * bt * ts * 4  # resident output blocks
            + 4 * H * H * 2                          # bf16 weight blocks
            + (bt * H + 4 * bt) * 4)                 # scratch
    vmem_limit = int(min(vmem_cap, max(32 << 20, 2 * need)))

    cost = pl.CostEstimate(
        flops=int(2 * b_pad * S * H * H + 2 * b_pad * H * H + 4 * b_pad * S * H),
        transcendentals=int(b_pad * S * H + 2 * b_pad * S),
        bytes_accessed=int((b_pad * S * H + b_pad * H) * itemsize
                           + 4 * H * H
                           + (b_pad * H + b_pad * S) * itemsize),
    )

    ctx2, w3 = pl.pallas_call(
        bahdanau_kernel,
        out_shape=(
            jax.ShapeDtypeStruct((b_pad, H), dtype),           # context (lane-dense)
            jax.ShapeDtypeStruct((nk, b_pad, ts), dtype),      # score/weight tiles
        ),
        grid_spec=pltpu.PrefetchScalarGridSpec(
            num_scalar_prefetch=0,
            grid=grid,
            in_specs=[
                pl.BlockSpec((bt, H), lambda i, k: (i, 0)),        # query rows
                pl.BlockSpec((bt, ts, H), lambda i, k: (i, k, 0)), # streamed keys tile
                pl.BlockSpec((H, H), lambda i, k: (0, 0)),         # Wa^T (bf16)
                pl.BlockSpec((H, H), lambda i, k: (0, 0)),         # Ua^T (bf16)
                pl.BlockSpec((1, H), lambda i, k: (0, 0)),         # Wa_b + Ua_b
                pl.BlockSpec((1, H), lambda i, k: (0, 0)),         # Va row
            ],
            out_specs=[
                pl.BlockSpec((bt, H), lambda i, k: (i, 0)),        # resident across k
                pl.BlockSpec((nk, bt, ts), lambda i, k: (0, i, 0)),# resident across k
            ],
            scratch_shapes=[
                pltpu.VMEM((bt, H), jnp.float32),   # Wa(query)+bias per batch tile
                pltpu.VMEM((bt, 1), jnp.float32),   # running max
                pltpu.VMEM((bt, 1), jnp.float32),   # running denom
            ],
        ),
        compiler_params=pltpu.CompilerParams(
            dimension_semantics=("parallel", "arbitrary"),
            vmem_limit_bytes=vmem_limit,
        ),
        cost_estimate=cost,
    )(q2, keys_p, wa_t, ua_t, bias, va_row)

    context = ctx2[:B].reshape(B, 1, H)
    # (nk, B_pad, ts) -> (B, 1, S): tiny B*S transpose, negligible vs keys traffic.
    weights = jnp.transpose(w3, (1, 0, 2)).reshape(b_pad, S)[:B].reshape(B, 1, S)
    return context, weights


def reference(query, keys, params):
    wq = query @ params["Wa_w"].T + params["Wa_b"]                    # (B,1,H)
    uk = keys @ params["Ua_w"].T + params["Ua_b"]                     # (B,S,H)
    scores = jnp.tanh(wq + uk) @ params["Va_w"].T + params["Va_b"]    # (B,S,1)
    scores = jnp.transpose(scores, (0, 2, 1))                         # (B,1,S)
    weights = jax.nn.softmax(scores, axis=-1)
    context = jnp.einsum("bqs,bsh->bqh", weights, keys)
    return context, weights


if __name__ == "__main__":
    B, S, H = 2, 8, 32
    key = jax.random.PRNGKey(0)
    kq, kk, k1, k2, k3, k4, k5, k6 = jax.random.split(key, 8)

    query = jax.random.normal(kq, (B, 1, H), dtype=jnp.float32)
    keys = jax.random.normal(kk, (B, S, H), dtype=jnp.float32)

    # deterministic parameter init (nn.Linear shapes: weight (out,in), bias (out,))
    scale = 1.0 / jnp.sqrt(H).astype(jnp.float32)
    params = {
        "Wa_w": jax.random.uniform(k1, (H, H), jnp.float32, -scale, scale),
        "Wa_b": jax.random.uniform(k2, (H,), jnp.float32, -scale, scale),
        "Ua_w": jax.random.uniform(k3, (H, H), jnp.float32, -scale, scale),
        "Ua_b": jax.random.uniform(k4, (H,), jnp.float32, -scale, scale),
        "Va_w": jax.random.uniform(k5, (1, H), jnp.float32, -scale, scale),
        "Va_b": jax.random.uniform(k6, (1,), jnp.float32, -scale, scale),
    }

    ctx, weights = bahdanau_attention(query, keys, params)
    jax.block_until_ready((ctx, weights))

    ctx_ref, w_ref = reference(query, keys, params)
    assert ctx.shape == (B, 1, H) and weights.shape == (B, 1, S)
    # bf16 MXU inputs (f32 accumulate) -> allow ~1e-2 absolute/relative slack.
    assert jnp.allclose(weights.sum(-1), 1.0, atol=1e-5)
    assert jnp.allclose(ctx, ctx_ref, atol=1e-2, rtol=1e-2)
    assert jnp.allclose(weights, w_ref, atol=1e-2, rtol=1e-2)

    print("KERNEL_OK")
</pallas_src>

<mosaic_0001>
module attributes {stable_mosaic.version = 11 : i64} {
  func.func @bahdanau_kernel(%arg0: i32, %arg1: i32, %arg2: memref<8x32xf32, #tpu.memory_space<vmem>>, %arg3: memref<8x8x32xf32, #tpu.memory_space<vmem>>, %arg4: memref<32x32xbf16, #tpu.memory_space<vmem>>, %arg5: memref<32x32xbf16, #tpu.memory_space<vmem>>, %arg6: memref<1x32xf32, #tpu.memory_space<vmem>>, %arg7: memref<1x32xf32, #tpu.memory_space<vmem>>, %arg8: memref<8x32xf32, #tpu.memory_space<vmem>>, %arg9: memref<1x8x8xf32, #tpu.memory_space<vmem>>, %arg10: memref<8x32xf32, #tpu.memory_space<vmem>>, %arg11: memref<8x1xf32, #tpu.memory_space<vmem>>, %arg12: memref<8x1xf32, #tpu.memory_space<vmem>>) attributes {dimension_semantics = [#tpu.dimension_semantics<parallel>, #tpu.dimension_semantics<arbitrary>], iteration_bounds = array<i64: 1, 1>, scalar_prefetch = 0 : i64, scratch_operands = 3 : i64, tpu.core_type = #tpu.core_type<tc>, window_params = [{transform_indices = @transform_0, window_bounds = array<i64: 8, 32>}, {transform_indices = @transform_1, window_bounds = array<i64: 8, 8, 32>}, {pipeline_mode = #tpu.pipeline_mode<synchronous>, transform_indices = @transform_2, window_bounds = array<i64: 32, 32>}, {pipeline_mode = #tpu.pipeline_mode<synchronous>, transform_indices = @transform_3, window_bounds = array<i64: 32, 32>}, {pipeline_mode = #tpu.pipeline_mode<synchronous>, transform_indices = @transform_4, window_bounds = array<i64: 1, 32>}, {pipeline_mode = #tpu.pipeline_mode<synchronous>, transform_indices = @transform_5, window_bounds = array<i64: 1, 32>}, {transform_indices = @transform_6, window_bounds = array<i64: 8, 32>}, {transform_indices = @transform_7, window_bounds = array<i64: 1, 8, 8>}]} {
    %c0_i32 = arith.constant 0 : i32
    %0 = arith.cmpi eq, %arg1, %c0_i32 : i32
    %1 = arith.extui %0 : i1 to i32
    %c0_i32_0 = arith.constant 0 : i32
    %2 = arith.cmpi ne, %1, %c0_i32_0 : i32
    scf.if %2 {
      %c0_29 = arith.constant 0 : index
      %c0_30 = arith.constant 0 : index
      %51 = vector.load %arg2[%c0_29, %c0_30] : memref<8x32xf32, #tpu.memory_space<vmem>>, vector<8x32xf32>
      %52 = arith.truncf %51 : vector<8x32xf32> to vector<8x32xbf16>
      %c0_31 = arith.constant 0 : index
      %c0_32 = arith.constant 0 : index
      %53 = vector.load %arg4[%c0_31, %c0_32] : memref<32x32xbf16, #tpu.memory_space<vmem>>, vector<32x32xbf16>
      %cst_33 = arith.constant dense<0.000000e+00> : vector<8x32xf32>
      %54 = tpu.matmul %52, %53, %cst_33 {dimension_numbers = #tpu.dot_dimension_numbers<[1], [0], [0], [1], [0, 0, 1, 1], [], []>} : vector<8x32xbf16>, vector<32x32xbf16>, vector<8x32xf32> -> vector<8x32xf32>
      %c0_34 = arith.constant 0 : index
      %c0_35 = arith.constant 0 : index
      %55 = vector.load %arg6[%c0_34, %c0_35] : memref<1x32xf32, #tpu.memory_space<vmem>>, vector<1x32xf32>
      %56 = vector.broadcast %55 : vector<1x32xf32> to vector<8x32xf32>
      %57 = arith.addf %54, %56 : vector<8x32xf32>
      %c0_36 = arith.constant 0 : index
      %c0_37 = arith.constant 0 : index
      %58 = vector.load %arg10[%c0_36, %c0_37] : memref<8x32xf32, #tpu.memory_space<vmem>>, vector<8x32xf32>
      tpu.vector_store %arg10[%c0_36, %c0_37], %57 {strides = array<i32>} : memref<8x32xf32, #tpu.memory_space<vmem>>, vector<8x32xf32>,
      %cst_38 = arith.constant 0xFF800000 : f32
      %59 = vector.broadcast %cst_38 : f32 to vector<8x1xf32>
      %c0_39 = arith.constant 0 : index
      %c0_40 = arith.constant 0 : index
      %60 = vector.load %arg11[%c0_39, %c0_40] : memref<8x1xf32, #tpu.memory_space<vmem>>, vector<8x1xf32>
      tpu.vector_store %arg11[%c0_39, %c0_40], %59 {strides = array<i32>} : memref<8x1xf32, #tpu.memory_space<vmem>>, vector<8x1xf32>,
      %cst_41 = arith.constant 0.000000e+00 : f32
      %61 = vector.broadcast %cst_41 : f32 to vector<8x1xf32>
      %c0_42 = arith.constant 0 : index
      %c0_43 = arith.constant 0 : index
      %62 = vector.load %arg12[%c0_42, %c0_43] : memref<8x1xf32, #tpu.memory_space<vmem>>, vector<8x1xf32>
      tpu.vector_store %arg12[%c0_42, %c0_43], %61 {strides = array<i32>} : memref<8x1xf32, #tpu.memory_space<vmem>>, vector<8x1xf32>,
      %cst_44 = arith.constant 0.000000e+00 : f32
      %63 = vector.broadcast %cst_44 : f32 to vector<8x32xf32>
      %c0_45 = arith.constant 0 : index
      %c0_46 = arith.constant 0 : index
      %64 = vector.load %arg8[%c0_45, %c0_46] : memref<8x32xf32, #tpu.memory_space<vmem>>, vector<8x32xf32>
      tpu.vector_store %arg8[%c0_45, %c0_46], %63 {strides = array<i32>} : memref<8x32xf32, #tpu.memory_space<vmem>>, vector<8x32xf32>,
    } else {
    }
    %c0 = arith.constant 0 : index
    %c0_1 = arith.constant 0 : index
    %c0_2 = arith.constant 0 : index
    %3 = vector.load %arg3[%c0, %c0_1, %c0_2] : memref<8x8x32xf32, #tpu.memory_space<vmem>>, vector<8x8x32xf32>
    %4 = arith.truncf %3 : vector<8x8x32xf32> to vector<8x8x32xbf16>
    %5 = vector.shape_cast %4 : vector<8x8x32xbf16> to vector<64x32xbf16>
    %c0_3 = arith.constant 0 : index
    %c0_4 = arith.constant 0 : index
    %6 = vector.load %arg5[%c0_3, %c0_4] : memref<32x32xbf16, #tpu.memory_space<vmem>>, vector<32x32xbf16>
    %cst = arith.constant dense<0.000000e+00> : vector<64x32xf32>
    %7 = tpu.matmul %5, %6, %cst {dimension_numbers = #tpu.dot_dimension_numbers<[1], [0], [0], [1], [0, 0, 1, 1], [], []>} : vector<64x32xbf16>, vector<32x32xbf16>, vector<64x32xf32> -> vector<64x32xf32>
    %8 = vector.shape_cast %7 : vector<64x32xf32> to vector<8x8x32xf32>
    %c0_5 = arith.constant 0 : index
    %c0_6 = arith.constant 0 : index
    %9 = vector.load %arg10[%c0_5, %c0_6] : memref<8x32xf32, #tpu.memory_space<vmem>>, vector<8x32xf32>
    %10 = vector.shape_cast %9 : vector<8x32xf32> to vector<8x1x32xf32>
    %11 = vector.broadcast %10 : vector<8x1x32xf32> to vector<8x8x32xf32>
    %12 = arith.addf %11, %8 : vector<8x8x32xf32>
    %13 = math.tanh %12 : vector<8x8x32xf32>
    %c0_7 = arith.constant 0 : index
    %c0_8 = arith.constant 0 : index
    %14 = vector.load %arg7[%c0_7, %c0_8] : memref<1x32xf32, #tpu.memory_space<vmem>>, vector<1x32xf32>
    %15 = vector.shape_cast %14 : vector<1x32xf32> to vector<1x1x32xf32>
    %16 = vector.broadcast %15 : vector<1x1x32xf32> to vector<8x8x32xf32>
    %17 = arith.mulf %13, %16 : vector<8x8x32xf32>
    %cst_9 = arith.constant dense<0.000000e+00> : vector<8x8xf32>
    %18 = vector.multi_reduction <add>, %17, %cst_9 [2] : vector<8x8x32xf32> to vector<8x8xf32>
    %c0_10 = arith.constant 0 : index
    %c0_11 = arith.constant 0 : index
    %19 = vector.load %arg11[%c0_10, %c0_11] : memref<8x1xf32, #tpu.memory_space<vmem>>, vector<8x1xf32>
    %cst_12 = arith.constant dense<0xFF800000> : vector<8xf32>
    %20 = vector.multi_reduction <maximumf>, %18, %cst_12 [1] : vector<8x8xf32> to vector<8xf32>
    %21 = vector.shape_cast %20 : vector<8xf32> to vector<8x1xf32>
    %22 = arith.maximumf %19, %21 : vector<8x1xf32>
    %23 = arith.subf %19, %22 : vector<8x1xf32>
    %24 = math.exp %23 : vector<8x1xf32>
    %25 = vector.broadcast %22 : vector<8x1xf32> to vector<8x8xf32>
    %26 = arith.subf %18, %25 : vector<8x8xf32>
    %27 = math.exp %26 : vector<8x8xf32>
    %c0_13 = arith.constant 0 : index
    %c0_14 = arith.constant 0 : index
    %28 = vector.load %arg11[%c0_13, %c0_14] : memref<8x1xf32, #tpu.memory_space<vmem>>, vector<8x1xf32>
    tpu.vector_store %arg11[%c0_13, %c0_14], %22 {strides = array<i32>} : memref<8x1xf32, #tpu.memory_space<vmem>>, vector<8x1xf32>,
    %c0_15 = arith.constant 0 : index
    %c0_16 = arith.constant 0 : index
    %29 = vector.load %arg12[%c0_15, %c0_16] : memref<8x1xf32, #tpu.memory_space<vmem>>, vector<8x1xf32>
    %30 = arith.mulf %24, %29 : vector<8x1xf32>
    %cst_17 = arith.constant dense<0.000000e+00> : vector<8xf32>
    %31 = vector.multi_reduction <add>, %27, %cst_17 [1] : vector<8x8xf32> to vector<8xf32>
    %32 = vector.shape_cast %31 : vector<8xf32> to vector<8x1xf32>
    %33 = arith.addf %30, %32 : vector<8x1xf32>
    %c0_18 = arith.constant 0 : index
    %c0_19 = arith.constant 0 : index
    %34 = vector.load %arg12[%c0_18, %c0_19] : memref<8x1xf32, #tpu.memory_space<vmem>>, vector<8x1xf32>
    tpu.vector_store %arg12[%c0_18, %c0_19], %33 {strides = array<i32>} : memref<8x1xf32, #tpu.memory_space<vmem>>, vector<8x1xf32>,
    %c0_20 = arith.constant 0 : index
    %c0_21 = arith.constant 0 : index
    %35 = vector.load %arg8[%c0_20, %c0_21] : memref<8x32xf32, #tpu.memory_space<vmem>>, vector<8x32xf32>
    %36 = vector.broadcast %24 : vector<8x1xf32> to vector<8x32xf32>
    %37 = arith.mulf %36, %35 : vector<8x32xf32>
    %38 = vector.shape_cast %27 : vector<8x8xf32> to vector<8x8x1xf32>
    %39 = vector.broadcast %38 : vector<8x8x1xf32> to vector<8x8x32xf32>
    %40 = arith.mulf %39, %3 : vector<8x8x32xf32>
    %cst_22 = arith.constant dense<0.000000e+00> : vector<8x32xf32>
    %41 = vector.multi_reduction <add>, %40, %cst_22 [1] : vector<8x8x32xf32> to vector<8x32xf32>
    %42 = arith.addf %37, %41 : vector<8x32xf32>
    %c0_23 = arith.constant 0 : index
    %c0_24 = arith.constant 0 : index
    %43 = vector.load %arg8[%c0_23, %c0_24] : memref<8x32xf32, #tpu.memory_space<vmem>>, vector<8x32xf32>
    tpu.vector_store %arg8[%c0_23, %c0_24], %42 {strides = array<i32>} : memref<8x32xf32, #tpu.memory_space<vmem>>, vector<8x32xf32>,
    %44 = arith.index_cast %arg1 : i32 to index
    %c0_25 = arith.constant 0 : index
    %c0_26 = arith.constant 0 : index
    %45 = vector.load %arg9[%44, %c0_25, %c0_26] : memref<1x8x8xf32, #tpu.memory_space<vmem>>, vector<1x8x8xf32>
    %46 = vector.shape_cast %45 : vector<1x8x8xf32> to vector<8x8xf32>
    %47 = vector.shape_cast %18 : vector<8x8xf32> to vector<1x8x8xf32>
    tpu.vector_store %arg9[%44, %c0_25, %c0_26], %47 {strides = array<i32>} : memref<1x8x8xf32, #tpu.memory_space<vmem>>, vector<1x8x8xf32>,
    %c0_i32_27 = arith.constant 0 : i32
    %48 = arith.cmpi eq, %arg1, %c0_i32_27 : i32
    %49 = arith.extui %48 : i1 to i32
    %c0_i32_28 = arith.constant 0 : i32
    %50 = arith.cmpi ne, %49, %c0_i32_28 : i32
    scf.if %50 {
      %c0_29 = arith.constant 0 : index
      %c0_30 = arith.constant 0 : index
      %51 = vector.load %arg12[%c0_29, %c0_30] : memref<8x1xf32, #tpu.memory_space<vmem>>, vector<8x1xf32>
      %52 = tpu.reciprocal %51 : vector<8x1xf32> -> vector<8x1xf32>
      %c0_31 = arith.constant 0 : index
      %c0_32 = arith.constant 0 : index
      %53 = vector.load %arg8[%c0_31, %c0_32] : memref<8x32xf32, #tpu.memory_space<vmem>>, vector<8x32xf32>
      %54 = vector.broadcast %52 : vector<8x1xf32> to vector<8x32xf32>
      %55 = arith.mulf %53, %54 : vector<8x32xf32>
      %c0_33 = arith.constant 0 : index
      %c0_34 = arith.constant 0 : index
      %56 = vector.load %arg8[%c0_33, %c0_34] : memref<8x32xf32, #tpu.memory_space<vmem>>, vector<8x32xf32>
      tpu.vector_store %arg8[%c0_33, %c0_34], %55 {strides = array<i32>} : memref<8x32xf32, #tpu.memory_space<vmem>>, vector<8x32xf32>,
      %c0_35 = arith.constant 0 : index
      %c0_36 = arith.constant 0 : index
      %c0_37 = arith.constant 0 : index
      %57 = vector.load %arg9[%c0_35, %c0_36, %c0_37] : memref<1x8x8xf32, #tpu.memory_space<vmem>>, vector<1x8x8xf32>
      %c0_38 = arith.constant 0 : index
      %c0_39 = arith.constant 0 : index
      %58 = vector.load %arg11[%c0_38, %c0_39] : memref<8x1xf32, #tpu.memory_space<vmem>>, vector<8x1xf32>
      %59 = vector.shape_cast %58 : vector<8x1xf32> to vector<1x8x1xf32>
      %60 = vector.broadcast %59 : vector<1x8x1xf32> to vector<1x8x8xf32>
      %61 = arith.subf %57, %60 : vector<1x8x8xf32>
      %62 = math.exp %61 : vector<1x8x8xf32>
      %63 = vector.shape_cast %52 : vector<8x1xf32> to vector<1x8x1xf32>
      %64 = vector.broadcast %63 : vector<1x8x1xf32> to vector<1x8x8xf32>
      %65 = arith.mulf %62, %64 : vector<1x8x8xf32>
      %c0_40 = arith.constant 0 : index
      %c0_41 = arith.constant 0 : index
      %c0_42 = arith.constant 0 : index
      %66 = vector.load %arg9[%c0_40, %c0_41, %c0_42] : memref<1x8x8xf32, #tpu.memory_space<vmem>>, vector<1x8x8xf32>
      tpu.vector_store %arg9[%c0_40, %c0_41, %c0_42], %65 {strides = array<i32>} : memref<1x8x8xf32, #tpu.memory_space<vmem>>, vector<1x8x8xf32>,
    } else {
    }
    return
  }
  func.func @transform_0(%arg0: i32, %arg1: i32) -> (i32, i32) {
    %c0_i32 = arith.constant 0 : i32
    %c0_i32_0 = arith.constant 0 : i32
    return %arg0, %c0_i32 : i32, i32
  }
  func.func @transform_1(%arg0: i32, %arg1: i32) -> (i32, i32, i32) {
    %c0_i32 = arith.constant 0 : i32
    %c0_i32_0 = arith.constant 0 : i32
    return %arg0, %arg1, %c0_i32 : i32, i32, i32
  }
  func.func @transform_2(%arg0: i32, %arg1: i32) -> (i32, i32) {
    %c0_i32 = arith.constant 0 : i32
    %c0_i32_0 = arith.constant 0 : i32
    %c0_i32_1 = arith.constant 0 : i32
    return %c0_i32, %c0_i32_0 : i32, i32
  }
  func.func @transform_3(%arg0: i32, %arg1: i32) -> (i32, i32) {
    %c0_i32 = arith.constant 0 : i32
    %c0_i32_0 = arith.constant 0 : i32
    %c0_i32_1 = arith.constant 0 : i32
    return %c0_i32, %c0_i32_0 : i32, i32
  }
  func.func @transform_4(%arg0: i32, %arg1: i32) -> (i32, i32) {
    %c0_i32 = arith.constant 0 : i32
    %c0_i32_0 = arith.constant 0 : i32
    %c0_i32_1 = arith.constant 0 : i32
    return %c0_i32, %c0_i32_0 : i32, i32
  }
  func.func @transform_5(%arg0: i32, %arg1: i32) -> (i32, i32) {
    %c0_i32 = arith.constant 0 : i32
    %c0_i32_0 = arith.constant 0 : i32
    %c0_i32_1 = arith.constant 0 : i32
    return %c0_i32, %c0_i32_0 : i32, i32
  }
  func.func @transform_6(%arg0: i32, %arg1: i32) -> (i32, i32) {
    %c0_i32 = arith.constant 0 : i32
    %c0_i32_0 = arith.constant 0 : i32
    return %arg0, %c0_i32 : i32, i32
  }
  func.func @transform_7(%arg0: i32, %arg1: i32) -> (i32, i32, i32) {
    %c0_i32 = arith.constant 0 : i32
    %c0_i32_0 = arith.constant 0 : i32
    %c0_i32_1 = arith.constant 0 : i32
    return %c0_i32, %arg0, %c0_i32_0 : i32, i32, i32
  }
}

</mosaic_0001>

<llo_original>
// kernel: tpu_custom_call.1
$region0: #{tpu_custom_call.1}
  #allocation0 [shape = 'u32[]', space=smem, size = 0x4, offset = 0x4, fixed_abs, tag = 'smem constant byte address 0x4 - core index']
  #allocation1 [shape = 'u32[144,128]{1,0:T(1,128)}', space=vmem, size = 0x12000, scoped, tag = 'internal scratch']
  #allocation2 [shape = 'f32[8,32]{1,0:T(8,128)}', space=vmem, size = 0x1000, scoped, tag = 'scratch operand']
  #allocation3 [shape = 'f32[8,1]{1,0:T(8,128)}', space=vmem, size = 0x1000, scoped, tag = 'scratch operand']
  #allocation4 [shape = 'f32[8,1]{1,0:T(8,128)}', space=vmem, size = 0x1000, scoped, tag = 'scratch operand']
  %s0 = inlined_call_operand.hbm [shape: f32[8,32], index: 0, kind: input, shape index: {}]
  %s1 = inlined_call_operand.hbm [shape: f32[8,8,32], index: 1, kind: input, shape index: {}]
  %s2 = inlined_call_operand.hbm [shape: bf16[32,32], index: 2, kind: input, shape index: {}]
  %s3 = inlined_call_operand.hbm [shape: bf16[32,32], index: 3, kind: input, shape index: {}]
  %s4 = inlined_call_operand.vmem [shape: f32[1,32], index: 4, kind: input, shape index: {}]
  %s5 = inlined_call_operand.vmem [shape: f32[1,32], index: 5, kind: input, shape index: {}]
  %s6 = inlined_call_operand.hbm [shape: f32[8,32], index: 6, kind: output, shape index: {0}]
  %s7 = inlined_call_operand.hbm [shape: f32[1,8,8], index: 7, kind: output, shape index: {1}]
  %8 = xla_tuple %s6, %s7
  %s9 = sld [smem:[#allocation0]]
  $region66: #{tpu_custom_call.1} parent=0
    _
  %s11 = ssub.s32 1, %s9
  %s12 = scalar_select 0, %s11, %s9
  $region1: #{tpu_custom_call.1} parent=0
    #allocation5 [shape = 'u8[4096]{0}', space=vmem, size = 0x1000, scoped, tag = 'input window, operand 0, single buffered']
    #allocation6 [shape = 's32[1]{0}', space=sflag, size = 0x4, scoped, tag = 'scoped memory for tpu_custom_call.1']
    #allocation7 [shape = 's32[1]{0}', space=sflag, size = 0x4, scoped, tag = 'scoped memory for tpu_custom_call.1']
    #allocation8 [shape = 'u8[32768]{0}', space=vmem, size = 0x8000, scoped, tag = 'input window, operand 1, single buffered']
    #allocation9 [shape = 's32[1]{0}', space=sflag, size = 0x4, scoped, tag = 'scoped memory for tpu_custom_call.1']
    #allocation10 [shape = 'u8[8192]{0}', space=vmem, size = 0x2000, scoped, tag = 'input window, operand 2, single buffered']
    #allocation11 [shape = 'u8[8192]{0}', space=vmem, size = 0x2000, scoped, tag = 'input window, operand 3, single buffered']
    #allocation12 [shape = 's32[1]{0}', space=sflag, size = 0x4, scoped, tag = 'scoped memory for tpu_custom_call.1']
    #allocation13 [shape = 'u8[4096]{0}', space=vmem, size = 0x1000, scoped, tag = 'output window, operand 0, single buffered']
    #allocation14 [shape = 'u8[4096]{0}', space=vmem, size = 0x1000, scoped, tag = 'output window, operand 1, single buffered']
    #allocation15 [shape = 's32[1]{0}', space=sflag, size = 0x4, scoped, tag = 'scoped memory for tpu_custom_call.1']
    %13 = vsyncpa [#allocation6], 0
    %14 = vsyncpa [#allocation9], 0
    %15 = vsyncpa [#allocation12], 0
    %16 = vsyncpa [#allocation7], 0
    %17 = vsyncpa [#allocation15], 0
    // Predicated region
    $region2: #{tpu_custom_call.1} parent=1 // pred_check
      _
    $region3: #{tpu_custom_call.1} parent=1 // pred_check_branch
      %19 = sbr.rel (0) target = $region5
    $region4: #{tpu_custom_call.1} parent=1 // pred_region
      %s21 = ssub.s32 128, 128
      %22 = vsyncadd [#allocation6], %s21
      %s24 = sshll.u32 [#allocation5], 4
      %s25 = int_to_ptr.vmem [resolvable:$true] %s24
      %27 = dma.hbm_to_vmem [thread:$0]  %s0, 128, %s25, [#allocation6]
    $region5: #{tpu_custom_call.1} parent=1 // pred_fallthru
      _
    // Predicated region
    $region6: #{tpu_custom_call.1} parent=1 // pred_check
      _
    $region7: #{tpu_custom_call.1} parent=1 // pred_check_branch
      %29 = sbr.rel (0) target = $region9
    $region8: #{tpu_custom_call.1} parent=1 // pred_region
      %s31 = ssub.s32 1024, 1024
      %32 = vsyncadd [#allocation9], %s31
      %s33 = sshll.u32 [#allocation8], 4
      %s34 = int_to_ptr.vmem [resolvable:$true] %s33
      %39 = dma.hbm_to_vmem [thread:$0]  %s1, 1024, %s34, [#allocation9], 128, 128, 8
    $region9: #{tpu_custom_call.1} parent=1 // pred_fallthru
      _
    // Predicated region
    $region10: #{tpu_custom_call.1} parent=1 // pred_check
      _
    $region11: #{tpu_custom_call.1} parent=1 // pred_check_branch
      %41 = sbr.rel (0) target = $region13
    $region12: #{tpu_custom_call.1} parent=1 // pred_region
      %s43 = ssub.s32 256, 256
      %44 = vsyncadd [#allocation9], %s43
      %s45 = sshll.u32 [#allocation10], 4
      %s46 = int_to_ptr.vmem [resolvable:$true] %s45
      %51 = dma.hbm_to_vmem [thread:$0]  %s2, 256, %s46, [#allocation9], 64, 64, 4
    $region13: #{tpu_custom_call.1} parent=1 // pred_fallthru
      _
    // Predicated region
    $region14: #{tpu_custom_call.1} parent=1 // pred_check
      _
    $region15: #{tpu_custom_call.1} parent=1 // pred_check_branch
      %53 = sbr.rel (0) target = $region17
    $region16: #{tpu_custom_call.1} parent=1 // pred_region
      %s55 = ssub.s32 256, 256
      %56 = vsyncadd [#allocation12], %s55
      %s57 = sshll.u32 [#allocation11], 4
      %s58 = int_to_ptr.vmem [resolvable:$true] %s57
      %63 = dma.hbm_to_vmem [thread:$0]  %s3, 256, %s58, [#allocation12], 64, 64, 4
    $region17: #{tpu_custom_call.1} parent=1 // pred_fallthru
      _
    // Predicated region
    $region18: #{tpu_custom_call.1} parent=1 // pred_check
      _
    $region19: #{tpu_custom_call.1} parent=1 // pred_check_branch
      %65 = sbr.rel (0) target = $region21
    $region20: #{tpu_custom_call.1} parent=1 // pred_region
      _
    $region21: #{tpu_custom_call.1} parent=1 // pred_fallthru
      _
    // Predicated region
    $region22: #{tpu_custom_call.1} parent=1 // pred_check
      _
    $region23: #{tpu_custom_call.1} parent=1 // pred_check_branch
      %67 = sbr.rel (0) target = $region25
    $region24: #{tpu_custom_call.1} parent=1 // pred_region
      _
    $region25: #{tpu_custom_call.1} parent=1 // pred_fallthru
      _
    // Predicated region
    $region26: #{tpu_custom_call.1} parent=1 // pred_check
      _
    $region27: #{tpu_custom_call.1} parent=1 // pred_check_branch
      %69 = sbr.rel (0) target = $region29
    $region28: #{tpu_custom_call.1} parent=1 // pred_region
      %70 = dma.done [#allocation6], 128
    $region29: #{tpu_custom_call.1} parent=1 // pred_fallthru
      _
    // Predicated region
    $region30: #{tpu_custom_call.1} parent=1 // pred_check
      _
    $region31: #{tpu_custom_call.1} parent=1 // pred_check_branch
      %72 = sbr.rel (0) target = $region33
    $region32: #{tpu_custom_call.1} parent=1 // pred_region
      %73 = dma.done [#allocation9], 1024
    $region33: #{tpu_custom_call.1} parent=1 // pred_fallthru
      _
    // Predicated region
    $region34: #{tpu_custom_call.1} parent=1 // pred_check
      _
    $region35: #{tpu_custom_call.1} parent=1 // pred_check_branch
      %75 = sbr.rel (0) target = $region37
    $region36: #{tpu_custom_call.1} parent=1 // pred_region
      %76 = dma.done [#allocation9], 256
    $region37: #{tpu_custom_call.1} parent=1 // pred_fallthru
      _
    // Predicated region
    $region38: #{tpu_custom_call.1} parent=1 // pred_check
      _
    $region39: #{tpu_custom_call.1} parent=1 // pred_check_branch
      %78 = sbr.rel (0) target = $region41
    $region40: #{tpu_custom_call.1} parent=1 // pred_region
      %79 = dma.done [#allocation12], 256
    $region41: #{tpu_custom_call.1} parent=1 // pred_fallthru
      _
    %p81 = scmp.eq.s32.totalorder 0, 0
    // Predicated region
    $region42: #{tpu_custom_call.1} parent=1 // pred_check
      %p82 = pneg %p81
    $region43: #{tpu_custom_call.1} parent=1 // pred_check_branch
      %84 = sbr.rel (%p82) target = $region45
    $region44: #{tpu_custom_call.1} parent=1 // pred_region
      %v85 = vld [vmem:[#allocation5] sm:$0xff]
      %v86 = vpack.c.bf16 %v85, %v85
      %v87 = vld [vmem:[#allocation10] sm:$0xf]
      %v88 = vld [vmem:[#allocation10 + $0x4] sm:$0xf]
      %v89 = vld [vmem:[#allocation10 + $0x8] sm:$0xf]
      %v90 = vld [vmem:[#allocation10 + $0xc] sm:$0xf]
      %v91 = vld [vmem:[%s4] sm:$0x1]
      %v93 = vlaneseq
      %v94 = vshrl.u32 %v93, 7
      %v95 = vsub.s32 0, %v94
      %v96 = vrot.slane %v91, %v95
      %v102 = vunpack.c.l.b16 %v87
      %v103 = vunpack.c.l.b16 %v88
      %v104 = vunpack.c.l.b16 %v89
      %v105 = vunpack.c.l.b16 %v90
      %v106 = vpack.c.b16 %v103, %v102
      %v107 = vpack.c.b16 %v105, %v104
      %vm110 = vcmask 261120
      %v112 = vsel %vm110, %v86, 0
      %114 = vmatprep.subr.bf16.mxu0 0
      %115 = vmatpush1.bf16.msra.mxu0 %v106
      %116 = vmatprep.subr.bf16.mxu0 0
      %117 = vmatpush1.bf16.msra.mxu0 %v107
      %118 = vmatprep.subr.bf16.mxu0 0
      %119 = vmatpush1.bf16.msra.mxu0 0
      %120 = vmatprep.subr.bf16.mxu0 0
      %121 = vmatpush1.bf16.msra.mxu0 0
      %122 = vmatprep.subr.bf16.mxu0 0
      %123 = vmatpush1.bf16.msra.mxu0 0
      %124 = vmatprep.subr.bf16.mxu0 0
      %125 = vmatpush1.bf16.msra.mxu0 0
      %126 = vmatprep.subr.bf16.mxu0 0
      %127 = vmatpush1.bf16.msra.mxu0 0
      %128 = vmatprep.subr.bf16.mxu0 0
      %129 = vmatpush1.bf16.msra.mxu0 0
      %130 = vmatprep.subr.bf16.mxu0 0
      %131 = vmatpush1.bf16.msra.mxu0 0
      %132 = vmatprep.subr.bf16.mxu0 0
      %133 = vmatpush1.bf16.msra.mxu0 0
      %134 = vmatprep.subr.bf16.mxu0 0
      %135 = vmatpush1.bf16.msra.mxu0 0
      %136 = vmatprep.subr.bf16.mxu0 0
      %137 = vmatpush1.bf16.msra.mxu0 0
      %138 = vmatprep.subr.bf16.mxu0 0
      %139 = vmatpush1.bf16.msra.mxu0 0
      %140 = vmatprep.subr.bf16.mxu0 0
      %141 = vmatpush1.bf16.msra.mxu0 0
      %142 = vmatprep.subr.bf16.mxu0 0
      %143 = vmatpush1.bf16.msra.mxu0 0
      %144 = vmatprep.subr.bf16.mxu0 0
      %145 = vmatpush1.bf16.msra.mxu0 0
      %146 = vmatprep.mubr.bf16.mxu0 0
      %147 = vmatmul.mubr.bf16.gmra.mrb[0].mxu0 %v112
      %v148 = vpop.f32.mrb[0].mxu0
      %v149 = vadd.f32 %v96, %v148
      %v150 = vpop.f32.mrb[0].mxu0
      %v151 = vpop.f32.mrb[0].mxu0
      %v152 = vpop.f32.mrb[0].mxu0
      %153 = vdwg.mxu0
      %154 = vst.msk [vmem:[#allocation2] sm:$0xff] %vm110, %v149
      %vm155 = vcmask 7168
      %156 = vst.msk [vmem:[#allocation3] sm:$0xff] %vm155, -inf
      %157 = vst.msk [vmem:[#allocation4] sm:$0xff] %vm155, 0.0
      %158 = vst.msk [vmem:[#allocation13] sm:$0xff] %vm110, 0.0
    $region45: #{tpu_custom_call.1} parent=1 // pred_fallthru
      _
    %v159 = vld [vmem:[#allocation8] sm:$0xff]
    %v160 = vld [vmem:[#allocation8 + $0x8] sm:$0xff]
    %v161 = vld [vmem:[#allocation8 + $0x10] sm:$0xff]
    %v162 = vld [vmem:[#allocation8 + $0x18] sm:$0xff]
    %v163 = vld [vmem:[#allocation8 + $0x20] sm:$0xff]
    %v164 = vld [vmem:[#allocation8 + $0x28] sm:$0xff]
    %v165 = vld [vmem:[#allocation8 + $0x30] sm:$0xff]
    %v166 = vld [vmem:[#allocation8 + $0x38] sm:$0xff]
    %v167 = vpack.c.bf16 %v159, %v159
    %v168 = vpack.c.bf16 %v160, %v160
    %v169 = vpack.c.bf16 %v161, %v161
    %v170 = vpack.c.bf16 %v162, %v162
    %v171 = vpack.c.bf16 %v163, %v163
    %v172 = vpack.c.bf16 %v164, %v164
    %v173 = vpack.c.bf16 %v165, %v165
    %v174 = vpack.c.bf16 %v166, %v166
    %v175 = vld [vmem:[#allocation11] sm:$0xf]
    %v176 = vld [vmem:[#allocation11 + $0x4] sm:$0xf]
    %v177 = vld [vmem:[#allocation11 + $0x8] sm:$0xf]
    %v178 = vld [vmem:[#allocation11 + $0xc] sm:$0xf]
    %v187 = vunpack.c.l.b16 %v167
    %v188 = vunpack.c.l.b16 %v168
    %v189 = vunpack.c.l.b16 %v169
    %v190 = vunpack.c.l.b16 %v170
    %v191 = vunpack.c.l.b16 %v171
    %v192 = vunpack.c.l.b16 %v172
    %v193 = vunpack.c.l.b16 %v173
    %v194 = vunpack.c.l.b16 %v174
    %v195 = vpack.c.b16 %v188, %v187
    %v196 = vpack.c.b16 %v190, %v189
    %v197 = vpack.c.b16 %v192, %v191
    %v198 = vpack.c.b16 %v194, %v193
    %v203 = vunpack.c.l.b16 %v175
    %v204 = vunpack.c.l.b16 %v176
    %v205 = vunpack.c.l.b16 %v177
    %v206 = vunpack.c.l.b16 %v178
    %v207 = vpack.c.b16 %v204, %v203
    %v208 = vpack.c.b16 %v206, %v205
    %vm211 = vcmask 261120
    %v213 = vsel %vm211, %v195, 0
    %v216 = vsel %vm211, %v196, 0
    %v219 = vsel %vm211, %v197, 0
    %v222 = vsel %vm211, %v198, 0
    %224 = vmatprep.subr.bf16.mxu0 0
    %225 = vmatpush1.bf16.msra.mxu0 %v207
    %226 = vmatprep.subr.bf16.mxu0 0
    %227 = vmatpush1.bf16.msra.mxu0 %v208
    %228 = vmatprep.subr.bf16.mxu0 0
    %229 = vmatpush1.bf16.msra.mxu0 0
    %230 = vmatprep.subr.bf16.mxu0 0
    %231 = vmatpush1.bf16.msra.mxu0 0
    %232 = vmatprep.subr.bf16.mxu0 0
    %233 = vmatpush1.bf16.msra.mxu0 0
    %234 = vmatprep.subr.bf16.mxu0 0
    %235 = vmatpush1.bf16.msra.mxu0 0
    %236 = vmatprep.subr.bf16.mxu0 0
    %237 = vmatpush1.bf16.msra.mxu0 0
    %238 = vmatprep.subr.bf16.mxu0 0
    %239 = vmatpush1.bf16.msra.mxu0 0
    %240 = vmatprep.subr.bf16.mxu0 0
    %241 = vmatpush1.bf16.msra.mxu0 0
    %242 = vmatprep.subr.bf16.mxu0 0
    %243 = vmatpush1.bf16.msra.mxu0 0
    %244 = vmatprep.subr.bf16.mxu0 0
    %245 = vmatpush1.bf16.msra.mxu0 0
    %246 = vmatprep.subr.bf16.mxu0 0
    %247 = vmatpush1.bf16.msra.mxu0 0
    %248 = vmatprep.subr.bf16.mxu0 0
    %249 = vmatpush1.bf16.msra.mxu0 0
    %250 = vmatprep.subr.bf16.mxu0 0
    %251 = vmatpush1.bf16.msra.mxu0 0
    %252 = vmatprep.subr.bf16.mxu0 0
    %253 = vmatpush1.bf16.msra.mxu0 0
    %254 = vmatprep.subr.bf16.mxu0 0
    %255 = vmatpush1.bf16.msra.mxu0 0
    %256 = vmatprep.mubr.bf16.mxu0 0
    %257 = vmatmul.mubr.bf16.gmra.mrb[0].mxu0 %v213
    %v258 = vpop.f32.mrb[0].mxu0
    %v259 = vadd.f32 0.0, %v258
    %v260 = vpop.f32.mrb[0].mxu0
    %v261 = vpop.f32.mrb[0].mxu0
    %v262 = vadd.f32 0.0, %v261
    %v263 = vpop.f32.mrb[0].mxu0
    %264 = vmatprep.mubr.bf16.mxu0 0
    %265 = vmatmul.mubr.bf16.gmra.mrb[0].mxu0 %v216
    %v266 = vpop.f32.mrb[0].mxu0
    %v267 = vadd.f32 0.0, %v266
    %v268 = vpop.f32.mrb[0].mxu0
    %v269 = vpop.f32.mrb[0].mxu0
    %v270 = vadd.f32 0.0, %v269
    %v271 = vpop.f32.mrb[0].mxu0
    %272 = vmatprep.mubr.bf16.mxu0 0
    %273 = vmatmul.mubr.bf16.gmra.mrb[0].mxu0 %v219
    %v274 = vpop.f32.mrb[0].mxu0
    %v275 = vadd.f32 0.0, %v274
    %v276 = vpop.f32.mrb[0].mxu0
    %v277 = vpop.f32.mrb[0].mxu0
    %v278 = vadd.f32 0.0, %v277
    %v279 = vpop.f32.mrb[0].mxu0
    %280 = vmatprep.mubr.bf16.mxu0 0
    %281 = vmatmul.mubr.bf16.gmra.mrb[0].mxu0 %v222
    %v282 = vpop.f32.mrb[0].mxu0
    %v283 = vadd.f32 0.0, %v282
    %v284 = vpop.f32.mrb[0].mxu0
    %v285 = vpop.f32.mrb[0].mxu0
    %v286 = vadd.f32 0.0, %v285
    %v287 = vpop.f32.mrb[0].mxu0
    %288 = vdwg.mxu0
    %v289 = vld [vmem:[#allocation2] sm:$0xff]
    %v291 = vcombine.high %v289, %v289
    %v293 = vunpack.c.l.s4 1966171168
    %v294 = vunpack.c.0.s8 %v293
    %v295 = vlaneseq
    %v296 = vshrl.u32 %v295, 7
    %v297 = vsub.s32 %v294, %v296
    %v298 = vrot.slane %v289, %v297
    %v300 = vunpack.c.l.s4 1966171168
    %v301 = vunpack.c.0.s8 %v300
    %v302 = vlaneseq
    %v303 = vshrl.u32 %v302, 7
    %v304 = vsub.s32 %v301, %v303
    %v305 = vrot.slane %v291, %v304
    %v306 = vcombine.high %v298, %v298
    %v307 = vcombine.high %v305, %v305
    %v309 = vunpack.c.l.s4 1966171168
    %v310 = vunpack.c.0.s8 %v309
    %v311 = vlaneseq
    %v312 = vshrl.u32 %v311, 7
    %v313 = vsub.s32 %v310, %v312
    %v314 = vrot.slane %v298, %v313
    %v316 = vunpack.c.l.s4 1966171168
    %v317 = vunpack.c.0.s8 %v316
    %v318 = vlaneseq
    %v319 = vshrl.u32 %v318, 7
    %v320 = vsub.s32 %v317, %v319
    %v321 = vrot.slane %v305, %v320
    %v323 = vunpack.c.l.s4 1966171168
    %v324 = vunpack.c.0.s8 %v323
    %v325 = vlaneseq
    %v326 = vshrl.u32 %v325, 7
    %v327 = vsub.s32 %v324, %v326
    %v328 = vrot.slane %v306, %v327
    %v330 = vunpack.c.l.s4 1966171168
    %v331 = vunpack.c.0.s8 %v330
    %v332 = vlaneseq
    %v333 = vshrl.u32 %v332, 7
    %v334 = vsub.s32 %v331, %v333
    %v335 = vrot.slane %v307, %v334
    %v336 = vcombine.high %v314, %v314
    %v337 = vcombine.high %v321, %v321
    %v338 = vcombine.high %v328, %v328
    %v339 = vcombine.high %v335, %v335
    %v340 = vlaneseq
    %v341 = vshrl.u32 %v340, 7
    %v342 = vsub.s32 0, %v341
    %v343 = vrot.slane %v314, %v342
    %v344 = vlaneseq
    %v345 = vshrl.u32 %v344, 7
    %v346 = vsub.s32 0, %v345
    %v347 = vrot.slane %v328, %v346
    %v348 = vlaneseq
    %v349 = vshrl.u32 %v348, 7
    %v350 = vsub.s32 0, %v349
    %v351 = vrot.slane %v336, %v350
    %v352 = vlaneseq
    %v353 = vshrl.u32 %v352, 7
    %v354 = vsub.s32 0, %v353
    %v355 = vrot.slane %v338, %v354
    %v356 = vlaneseq
    %v357 = vshrl.u32 %v356, 7
    %v358 = vsub.s32 0, %v357
    %v359 = vrot.slane %v321, %v358
    %v360 = vlaneseq
    %v361 = vshrl.u32 %v360, 7
    %v362 = vsub.s32 0, %v361
    %v363 = vrot.slane %v335, %v362
    %v364 = vlaneseq
    %v365 = vshrl.u32 %v364, 7
    %v366 = vsub.s32 0, %v365
    %v367 = vrot.slane %v337, %v366
    %v368 = vlaneseq
    %v369 = vshrl.u32 %v368, 7
    %v370 = vsub.s32 0, %v369
    %v371 = vrot.slane %v339, %v370
    %v380 = vadd.f32 %v343, %v259
    %v381 = vadd.f32 %v347, %v262
    %v382 = vadd.f32 %v351, %v267
    %v383 = vadd.f32 %v355, %v270
    %v384 = vadd.f32 %v359, %v275
    %v385 = vadd.f32 %v363, %v278
    %v386 = vadd.f32 %v367, %v283
    %v387 = vadd.f32 %v371, %v286
    %v388 = vtanh.pop %v380
    %v389 = vtanh.pop %v381
    %v390 = vtanh.pop %v382
    %v391 = vtanh.pop %v383
    %v392 = vtanh.pop %v384
    %v393 = vtanh.pop %v385
    %v394 = vtanh.pop %v386
    %v395 = vtanh.pop %v387
    %v396 = vld [vmem:[%s5] sm:$0x1]
    %v398 = vlaneseq
    %v399 = vshrl.u32 %v398, 7
    %v400 = vsub.s32 0, %v399
    %v401 = vrot.slane %v396, %v400
    %v403 = vmul.f32 %v388, %v401
    %v404 = vmul.f32 %v389, %v401
    %v405 = vmul.f32 %v390, %v401
    %v406 = vmul.f32 %v391, %v401
    %v407 = vmul.f32 %v392, %v401
    %v408 = vmul.f32 %v393, %v401
    %v409 = vmul.f32 %v394, %v401
    %v410 = vmul.f32 %v395, %v401
    %v411 = vsel %vm211, %v403, 0.0
    %412 = vadd.xlane.f32.xlu0 %v411
    %v413 = vpop.xlane.xlu0 %412
    %v414 = vsel %vm211, %v404, 0.0
    %415 = vadd.xlane.f32.xlu0 %v414
    %v416 = vpop.xlane.xlu0 %415
    %v417 = vsel %vm211, %v405, 0.0
    %418 = vadd.xlane.f32.xlu0 %v417
    %v419 = vpop.xlane.xlu0 %418
    %v420 = vsel %vm211, %v406, 0.0
    %421 = vadd.xlane.f32.xlu0 %v420
    %v422 = vpop.xlane.xlu0 %421
    %v423 = vsel %vm211, %v407, 0.0
    %424 = vadd.xlane.f32.xlu0 %v423
    %v425 = vpop.xlane.xlu0 %424
    %v426 = vsel %vm211, %v408, 0.0
    %427 = vadd.xlane.f32.xlu0 %v426
    %v428 = vpop.xlane.xlu0 %427
    %v429 = vsel %vm211, %v409, 0.0
    %430 = vadd.xlane.f32.xlu0 %v429
    %v431 = vpop.xlane.xlu0 %430
    %v432 = vsel %vm211, %v410, 0.0
    %433 = vadd.xlane.f32.xlu0 %v432
    %v434 = vpop.xlane.xlu0 %433
    %v435 = vld [vmem:[#allocation3] sm:$0xff]
    %v444 = vlaneseq
    %v445 = vand.u32 %v444, 127
    %v446 = vlaneseq
    %v447 = vshrl.u32 %v446, 7
    %v448 = vsub.s32 %v445, %v447
    %v449 = vrot.slane %v413, %v448
    %v450 = vlaneseq
    %v451 = vshrl.u32 %v450, 7
    %v452 = vsub.s32 %v445, %v451
    %v453 = vrot.slane %v416, %v452
    %v454 = vlaneseq
    %v455 = vshrl.u32 %v454, 7
    %v456 = vsub.s32 %v445, %v455
    %v457 = vrot.slane %v419, %v456
    %v458 = vlaneseq
    %v459 = vshrl.u32 %v458, 7
    %v460 = vsub.s32 %v445, %v459
    %v461 = vrot.slane %v422, %v460
    %v462 = vlaneseq
    %v463 = vshrl.u32 %v462, 7
    %v464 = vsub.s32 %v445, %v463
    %v465 = vrot.slane %v425, %v464
    %v466 = vlaneseq
    %v467 = vshrl.u32 %v466, 7
    %v468 = vsub.s32 %v445, %v467
    %v469 = vrot.slane %v428, %v468
    %v470 = vlaneseq
    %v471 = vshrl.u32 %v470, 7
    %v472 = vsub.s32 %v445, %v471
    %v473 = vrot.slane %v431, %v472
    %v474 = vlaneseq
    %v475 = vshrl.u32 %v474, 7
    %v476 = vsub.s32 %v445, %v475
    %v477 = vrot.slane %v434, %v476
    %vm478 = vcmask 1041409
    %v479 = vsel %vm478, %v453, %v449
    %vm480 = vcmask 1042434
    %v481 = vsel %vm480, %v457, %v479
    %vm482 = vcmask 1043459
    %v483 = vsel %vm482, %v461, %v481
    %vm484 = vcmask 1044484
    %v485 = vsel %vm484, %v465, %v483
    %vm486 = vcmask 1045509
    %v487 = vsel %vm486, %v469, %v485
    %vm488 = vcmask 1046534
    %v489 = vsel %vm488, %v473, %v487
    %vm490 = vcmask 1047559
    %v491 = vsel %vm490, %v477, %v489
    %vm493 = vcmask 64512
    %v494 = vsel %vm493, %v491, -inf
    %495 = vmax.xlane.f32.xlu0 %v494
    %v496 = vpop.xlane.xlu0 %495
    %v497 = vmax.f32 %v435, %v496
    %v498 = vsub.f32 %v435, %v497
    %v499 = vmul.f32 %v498, 1.442695
    %v500 = vpow.pop %v499
    %502 = vset.pattern.permute.xlu0 0
    %503 = vperm.xlu0 %502, %v497
    %v504 = vpop.permute.xlu0 %503
    %v505 = vlaneseq
    %v506 = vshrl.u32 %v505, 7
    %v507 = vsub.s32 0, %v506
    %v508 = vrot.slane %v504, %v507
    %v509 = vlaneseq
    %v510 = vshrl.u32 %v509, 7
    %v511 = vsub.s32 1, %v510
    %v512 = vrot.slane %v504, %v511
    %v513 = vlaneseq
    %v514 = vshrl.u32 %v513, 7
    %v515 = vsub.s32 2, %v514
    %v516 = vrot.slane %v504, %v515
    %v517 = vlaneseq
    %v518 = vshrl.u32 %v517, 7
    %v519 = vsub.s32 3, %v518
    %v520 = vrot.slane %v504, %v519
    %v521 = vlaneseq
    %v522 = vshrl.u32 %v521, 7
    %v523 = vsub.s32 4, %v522
    %v524 = vrot.slane %v504, %v523
    %v525 = vlaneseq
    %v526 = vshrl.u32 %v525, 7
    %v527 = vsub.s32 5, %v526
    %v528 = vrot.slane %v504, %v527
    %v529 = vlaneseq
    %v530 = vshrl.u32 %v529, 7
    %v531 = vsub.s32 6, %v530
    %v532 = vrot.slane %v504, %v531
    %v533 = vlaneseq
    %v534 = vshrl.u32 %v533, 7
    %v535 = vsub.s32 7, %v534
    %v536 = vrot.slane %v504, %v535
    %v545 = vsub.f32 %v413, %v508
    %v546 = vsub.f32 %v416, %v512
    %v547 = vsub.f32 %v419, %v516
    %v548 = vsub.f32 %v422, %v520
    %v549 = vsub.f32 %v425, %v524
    %v550 = vsub.f32 %v428, %v528
    %v551 = vsub.f32 %v431, %v532
    %v552 = vsub.f32 %v434, %v536
    %v553 = vmul.f32 %v545, 1.442695
    %v554 = vpow.pop %v553
    %v555 = vmul.f32 %v546, 1.442695
    %v556 = vpow.pop %v555
    %v557 = vmul.f32 %v547, 1.442695
    %v558 = vpow.pop %v557
    %v559 = vmul.f32 %v548, 1.442695
    %v560 = vpow.pop %v559
    %v561 = vmul.f32 %v549, 1.442695
    %v562 = vpow.pop %v561
    %v563 = vmul.f32 %v550, 1.442695
    %v564 = vpow.pop %v563
    %v565 = vmul.f32 %v551, 1.442695
    %v566 = vpow.pop %v565
    %v567 = vmul.f32 %v552, 1.442695
    %v568 = vpow.pop %v567
    %vm569 = vcmask 7168
    %570 = vst.msk [vmem:[#allocation3] sm:$0xff] %vm569, %v497
    %v571 = vld [vmem:[#allocation4] sm:$0xff]
    %v572 = vmul.f32 %v500, %v571
    %581 = vset.pattern.permute.xlu0 0
    %582 = vperm.xlu0 %581, %v554
    %v583 = vpop.permute.xlu0 %582
    %584 = vset.pattern.permute.xlu0 0
    %585 = vperm.xlu0 %584, %v556
    %v586 = vpop.permute.xlu0 %585
    %587 = vset.pattern.permute.xlu0 0
    %588 = vperm.xlu0 %587, %v558
    %v589 = vpop.permute.xlu0 %588
    %590 = vset.pattern.permute.xlu0 0
    %591 = vperm.xlu0 %590, %v560
    %v592 = vpop.permute.xlu0 %591
    %593 = vset.pattern.permute.xlu0 0
    %594 = vperm.xlu0 %593, %v562
    %v595 = vpop.permute.xlu0 %594
    %596 = vset.pattern.permute.xlu0 0
    %597 = vperm.xlu0 %596, %v564
    %v598 = vpop.permute.xlu0 %597
    %599 = vset.pattern.permute.xlu0 0
    %600 = vperm.xlu0 %599, %v566
    %v601 = vpop.permute.xlu0 %600
    %602 = vset.pattern.permute.xlu0 0
    %603 = vperm.xlu0 %602, %v568
    %v604 = vpop.permute.xlu0 %603
    %v605 = vlaneseq
    %v606 = vshrl.u32 %v605, 7
    %v607 = vsub.s32 %v445, %v606
    %v608 = vrot.slane %v583, %v607
    %v609 = vlaneseq
    %v610 = vshrl.u32 %v609, 7
    %v611 = vsub.s32 %v445, %v610
    %v612 = vrot.slane %v586, %v611
    %v613 = vlaneseq
    %v614 = vshrl.u32 %v613, 7
    %v615 = vsub.s32 %v445, %v614
    %v616 = vrot.slane %v589, %v615
    %v617 = vlaneseq
    %v618 = vshrl.u32 %v617, 7
    %v619 = vsub.s32 %v445, %v618
    %v620 = vrot.slane %v592, %v619
    %v621 = vlaneseq
    %v622 = vshrl.u32 %v621, 7
    %v623 = vsub.s32 %v445, %v622
    %v624 = vrot.slane %v595, %v623
    %v625 = vlaneseq
    %v626 = vshrl.u32 %v625, 7
    %v627 = vsub.s32 %v445, %v626
    %v628 = vrot.slane %v598, %v627
    %v629 = vlaneseq
    %v630 = vshrl.u32 %v629, 7
    %v631 = vsub.s32 %v445, %v630
    %v632 = vrot.slane %v601, %v631
    %v633 = vlaneseq
    %v634 = vshrl.u32 %v633, 7
    %v635 = vsub.s32 %v445, %v634
    %v636 = vrot.slane %v604, %v635
    %v637 = vsel %vm478, %v612, %v608
    %v638 = vsel %vm480, %v616, %v637
    %v639 = vsel %vm482, %v620, %v638
    %v640 = vsel %vm484, %v624, %v639
    %v641 = vsel %vm486, %v628, %v640
    %v642 = vsel %vm488, %v632, %v641
    %v643 = vsel %vm490, %v636, %v642
    %v645 = vsel %vm493, %v643, 0.0
    %646 = vadd.xlane.f32.xlu0 %v645
    %v647 = vpop.xlane.xlu0 %646
    %v648 = vadd.f32 %v572, %v647
    %649 = vst.msk [vmem:[#allocation4] sm:$0xff] %vm569, %v648
    %v650 = vld [vmem:[#allocation13] sm:$0xff]
    %652 = vset.pattern.permute.xlu0 0
    %653 = vperm.xlu0 %652, %v500
    %v654 = vpop.permute.xlu0 %653
    %v656 = vmul.f32 %v654, %v650
    %v665 = vmul.f32 %v583, %v159
    %v666 = vmul.f32 %v586, %v160
    %v667 = vmul.f32 %v589, %v161
    %v668 = vmul.f32 %v592, %v162
    %v669 = vmul.f32 %v595, %v163
    %v670 = vmul.f32 %v598, %v164
    %v671 = vmul.f32 %v601, %v165
    %v672 = vmul.f32 %v604, %v166
    %v673 = vsel %vm211, %v665, 0.0
    %v674 = vrot.slane %v673, 4
    %v675 = vadd.f32 %v673, %v674
    %v676 = vrot.slane %v675, 2
    %v677 = vadd.f32 %v675, %v676
    %v678 = vrot.slane %v677, 1
    %v679 = vadd.f32 %v677, %v678
    %v680 = vsel %vm211, %v666, 0.0
    %v681 = vrot.slane %v680, 4
    %v682 = vadd.f32 %v680, %v681
    %v683 = vrot.slane %v682, 2
    %v684 = vadd.f32 %v682, %v683
    %v685 = vrot.slane %v684, 1
    %v686 = vadd.f32 %v684, %v685
    %v687 = vsel %vm211, %v667, 0.0
    %v688 = vrot.slane %v687, 4
    %v689 = vadd.f32 %v687, %v688
    %v690 = vrot.slane %v689, 2
    %v691 = vadd.f32 %v689, %v690
    %v692 = vrot.slane %v691, 1
    %v693 = vadd.f32 %v691, %v692
    %v694 = vsel %vm211, %v668, 0.0
    %v695 = vrot.slane %v694, 4
    %v696 = vadd.f32 %v694, %v695
    %v697 = vrot.slane %v696, 2
    %v698 = vadd.f32 %v696, %v697
    %v699 = vrot.slane %v698, 1
    %v700 = vadd.f32 %v698, %v699
    %v701 = vsel %vm211, %v669, 0.0
    %v702 = vrot.slane %v701, 4
    %v703 = vadd.f32 %v701, %v702
    %v704 = vrot.slane %v703, 2
    %v705 = vadd.f32 %v703, %v704
    %v706 = vrot.slane %v705, 1
    %v707 = vadd.f32 %v705, %v706
    %v708 = vsel %vm211, %v670, 0.0
    %v709 = vrot.slane %v708, 4
    %v710 = vadd.f32 %v708, %v709
    %v711 = vrot.slane %v710, 2
    %v712 = vadd.f32 %v710, %v711
    %v713 = vrot.slane %v712, 1
    %v714 = vadd.f32 %v712, %v713
    %v715 = vsel %vm211, %v671, 0.0
    %v716 = vrot.slane %v715, 4
    %v717 = vadd.f32 %v715, %v716
    %v718 = vrot.slane %v717, 2
    %v719 = vadd.f32 %v717, %v718
    %v720 = vrot.slane %v719, 1
    %v721 = vadd.f32 %v719, %v720
    %v722 = vsel %vm211, %v672, 0.0
    %v723 = vrot.slane %v722, 4
    %v724 = vadd.f32 %v722, %v723
    %v725 = vrot.slane %v724, 2
    %v726 = vadd.f32 %v724, %v725
    %v727 = vrot.slane %v726, 1
    %v728 = vadd.f32 %v726, %v727
    %v737 = vsel %vm478, %v686, %v679
    %v738 = vsel %vm480, %v693, %v737
    %v739 = vsel %vm482, %v700, %v738
    %v740 = vsel %vm484, %v707, %v739
    %v741 = vsel %vm486, %v714, %v740
    %v742 = vsel %vm488, %v721, %v741
    %v743 = vsel %vm490, %v728, %v742
    %v745 = vadd.f32 %v656, %v743
    %746 = vst.msk [vmem:[#allocation13] sm:$0xff] %vm211, %v745
    %s747 = smul.u32 0, 8
    %s748 = scalar_lea.vmem [#allocation14], %s747
    %749 = vst.msk [vmem:[%s748] sm:$0xff] %vm493, %v491
    // Predicated region
    $region46: #{tpu_custom_call.1} parent=1 // pred_check
      %p750 = pneg %p81
    $region47: #{tpu_custom_call.1} parent=1 // pred_check_branch
      %752 = sbr.rel (%p750) target = $region49
    $region48: #{tpu_custom_call.1} parent=1 // pred_region
      %v753 = vld [vmem:[#allocation4] sm:$0xff]
      %v754 = vrcp.pop %v753
      %v755 = vld [vmem:[#allocation13] sm:$0xff]
      %757 = vset.pattern.permute.xlu0 0
      %758 = vperm.xlu0 %757, %v754
      %v759 = vpop.permute.xlu0 %758
      %v761 = vmul.f32 %v755, %v759
      %762 = vst.msk [vmem:[#allocation13] sm:$0xff] %vm211, %v761
      %v763 = vld [vmem:[#allocation14] sm:$0xff]
      %v764 = vld [vmem:[#allocation3] sm:$0xff]
      %766 = vset.pattern.permute.xlu0 0
      %767 = vperm.xlu0 %766, %v764
      %v768 = vpop.permute.xlu0 %767
      %v770 = vsub.f32 %v763, %v768
      %v771 = vmul.f32 %v770, 1.442695
      %v772 = vpow.pop %v771
      %v773 = vmul.f32 %v772, %v759
      %774 = vst.msk [vmem:[#allocation14] sm:$0xff] %vm493, %v773
    $region49: #{tpu_custom_call.1} parent=1 // pred_fallthru
      _
    // Predicated region
    $region50: #{tpu_custom_call.1} parent=1 // pred_check
      _
    $region51: #{tpu_custom_call.1} parent=1 // pred_check_branch
      %776 = sbr.rel (0) target = $region53
    $region52: #{tpu_custom_call.1} parent=1 // pred_region
      %s778 = ssub.s32 128, 128
      %779 = vsyncadd [#allocation7], %s778
      %s781 = sshll.u32 [#allocation13], 4
      %s782 = int_to_ptr.vmem [resolvable:$true] %s781
      %784 = dma.vmem_to_hbm [thread:$0]  %s782, 128, %s6, [#allocation7]
    $region53: #{tpu_custom_call.1} parent=1 // pred_fallthru
      _
    // Predicated region
    $region54: #{tpu_custom_call.1} parent=1 // pred_check
      _
    $region55: #{tpu_custom_call.1} parent=1 // pred_check_branch
      %786 = sbr.rel (0) target = $region57
    $region56: #{tpu_custom_call.1} parent=1 // pred_region
      %s788 = ssub.s32 128, 128
      %789 = vsyncadd [#allocation15], %s788
      %s791 = sshll.u32 [#allocation14], 4
      %s792 = int_to_ptr.vmem [resolvable:$true] %s791
      %794 = dma.vmem_to_hbm [thread:$0]  %s792, 128, %s7, [#allocation15]
    $region57: #{tpu_custom_call.1} parent=1 // pred_fallthru
      _
    // Predicated region
    $region58: #{tpu_custom_call.1} parent=1 // pred_check
      _
    $region59: #{tpu_custom_call.1} parent=1 // pred_check_branch
      %796 = sbr.rel (0) target = $region61
    $region60: #{tpu_custom_call.1} parent=1 // pred_region
      %797 = dma.done [#allocation7], 128
    $region61: #{tpu_custom_call.1} parent=1 // pred_fallthru
      _
    // Predicated region
    $region62: #{tpu_custom_call.1} parent=1 // pred_check
      _
    $region63: #{tpu_custom_call.1} parent=1 // pred_check_branch
      %799 = sbr.rel (0) target = $region65
    $region64: #{tpu_custom_call.1} parent=1 // pred_region
      %800 = dma.done [#allocation15], 128
    $region65: #{tpu_custom_call.1} parent=1 // pred_fallthru
      _
    %801 = vsyncpa [#allocation6], 1
    %802 = vsyncpa [#allocation9], 1
    %803 = vsyncpa [#allocation12], 1
    %804 = vsyncpa [#allocation7], 1
    %805 = vsyncpa [#allocation15], 1

</llo_original>
